<compile_context>
chip_gen: v6e
topology: v6e:2x2x1
jax: 0.10.0
libtpu: 0.0.40
codegen_flags: <defaults>
</compile_context>

<pallas_src>
import functools

import jax
import jax.numpy as jnp
from jax.experimental import pallas as pl
from jax.experimental.pallas import tpu as pltpu

_LANE = 128


def _round_up(n, m):
    return ((n + m - 1) // m) * m


def _apply_activation(x, activation: str):
    if activation == "relu":
        return jnp.maximum(x, 0.0)
    elif activation == "tanh":
        return jnp.tanh(x)          # EUP transcendental — separate bundle slot
    elif activation == "sigmoid":
        return jax.nn.sigmoid(x)    # EUP transcendental
    elif activation == "none":
        return x
    else:
        raise ValueError(f"Invalid activation function: {activation}")


def _pick_batch_tile(batch, cap=2048):
    """Batch tile: multiple of 8, <= cap, and <= batch//2 when batch >= 16 so the
    grid has >= 2 steps (lets v7x shard the 'parallel' axis over both TCs;
    harmless no-op on single-TC v5e/v6e).  Partial last tiles are masked."""
    if batch < 16:
        return batch                       # block dim equals full array dim -> legal
    half = max(8, (batch // 2) // 8 * 8)
    return min(cap, half)


def _fused_mlp_kernel(x_ref, w_ref, b_ref, o_ref, *, activations, out_features):
    """Whole MLP in one body. x_ref: (tb, P); w_ref: (L, P, P); b_ref: (L, 1, P);
    o_ref: (tb, out_features).  All layers run back-to-back on the MXU with f32
    accumulation; intermediates never leave vregs/VMEM."""
    h = x_ref[...]
    for li, act in enumerate(activations):        # static unroll at trace time
        w = w_ref[li]                             # (P, P)
        b = b_ref[li]                             # (1, P) -> broadcast add
        h = jnp.dot(h, w, preferred_element_type=jnp.float32) + b
        h = _apply_activation(h, act)
    if out_features != h.shape[-1]:
        h = h[:, :out_features]                   # static lane slice of the valid cols
    o_ref[...] = h.astype(o_ref.dtype)


def _fused_mlp_forward(x, w_stack, b_stack, *, activations, out_features):
    """One pallas_call for the whole MLP. Batch tiled; weight/bias slabs are
    full-array resident blocks (constant index_map -> fetched once)."""
    batch, in_f = x.shape
    n_layers, pdim, _ = w_stack.shape
    if in_f < pdim:                               # lane-pad x once; zero cols hit zero
        x = jnp.pad(x, ((0, 0), (0, pdim - in_f)))  # weight rows, so math is exact

    tb = _pick_batch_tile(batch)
    grid = (pl.cdiv(batch, tb),)                  # partial last tile is masked

    kernel = functools.partial(
        _fused_mlp_kernel, activations=tuple(activations), out_features=out_features)

    return pl.pallas_call(
        kernel,
        out_shape=jax.ShapeDtypeStruct((batch, out_features), jnp.float32),
        grid=grid,
        in_specs=[
            pl.BlockSpec((tb, pdim), lambda i: (i, 0)),
            pl.BlockSpec((n_layers, pdim, pdim), lambda i: (0, 0, 0)),
            pl.BlockSpec((n_layers, 1, pdim), lambda i: (0, 0, 0)),
        ],
        out_specs=pl.BlockSpec((tb, out_features), lambda i: (i, 0)),
        compiler_params=pltpu.CompilerParams(
            dimension_semantics=("parallel",),    # megacore-shardable batch axis
        ),
    )(x, w_stack, b_stack)


class CurvePredictorPallas:
    """JAX/Pallas port of the PyTorch CurvePredictor MLP (forward pass only)."""

    def __init__(self, input_size, hidden_sizes, output_size, activation,
                 l1_lambda, l2_lambda, key):
        self.activation = activation
        self.l1_lambda = l1_lambda
        self.l2_lambda = l2_lambda
        self.output_size = output_size

        sizes = [input_size] + list(hidden_sizes) + [output_size]
        n_layers = len(sizes) - 1
        # Per-layer activation (last layer has none), matching the PyTorch module.
        self.layer_activations = tuple([activation] * (n_layers - 1) + ["none"])
        # Invariant required for the zero-padding trick (see header comment).
        assert self.layer_activations[-1] == "none"

        # Original (unpadded) params — reference path and l1/l2 regularizers
        # (semantics identical to the PyTorch module).
        self.params = []
        for i in range(n_layers):
            fan_in, fan_out = sizes[i], sizes[i + 1]
            key, kw, kb = jax.random.split(key, 3)
            bound = 1.0 / jnp.sqrt(fan_in)
            # nn.Linear default init: U(-1/sqrt(fan_in), 1/sqrt(fan_in))
            w = jax.random.uniform(kw, (fan_in, fan_out), jnp.float32,
                                   minval=-bound, maxval=bound)
            b = jax.random.uniform(kb, (fan_out,), jnp.float32,
                                   minval=-bound, maxval=bound)
            self.params.append((w, b))

        # Uniform lane-dense padding width P: every layer dim rounded up to 128,
        # then the max is used so all layers stack into single W / B slabs.
        pdim = max(_round_up(s, _LANE) for s in sizes)
        self.pdim = pdim
        w_stack = jnp.zeros((n_layers, pdim, pdim), jnp.float32)
        b_stack = jnp.zeros((n_layers, 1, pdim), jnp.float32)
        for i, (w, b) in enumerate(self.params):
            fan_in, fan_out = w.shape
            w_stack = w_stack.at[i, :fan_in, :fan_out].set(w)
            b_stack = b_stack.at[i, 0, :fan_out].set(b)
        self.w_stack = w_stack
        self.b_stack = b_stack

        self._forward = jax.jit(
            functools.partial(
                _fused_mlp_forward,
                activations=self.layer_activations,
                out_features=output_size,
            )
        )

    def __call__(self, x):
        return self._forward(x, self.w_stack, self.b_stack)

    def forward_ref(self, x):
        """Pure-jnp reference for correctness checking."""
        out = x
        n = len(self.params)
        for idx, (w, b) in enumerate(self.params):
            out = out @ w + b
            if idx < n - 1:
                out = _apply_activation(out, self.activation)
        return out

    def l1_loss(self):
        r = jnp.float32(0.0)
        for w, b in self.params:
            r += jnp.sum(jnp.abs(w)) + jnp.sum(jnp.abs(b))
        return self.l1_lambda * r

    def l2_loss(self):
        r = jnp.float32(0.0)
        for w, b in self.params:
            # torch.norm(param, 2) is the Frobenius norm per-parameter, summed.
            r += jnp.sqrt(jnp.sum(w * w)) + jnp.sqrt(jnp.sum(b * b))
        return self.l2_lambda * r


if __name__ == "__main__":
    key = jax.random.PRNGKey(0)
    kx, kx2, kp, kp2 = jax.random.split(key, 4)

    input_size = 76          # feature = data.iloc[:, :76]
    hidden_sizes = [32, 16]
    output_size = 8

    # batch=64 -> tb=32, grid=2 (exercises the multi-step / megacore path)
    batch = 64
    x = jax.random.uniform(kx, (batch, input_size), jnp.float32)  # MinMax-scaled -> [0,1]

    # relu model (matches the original default use)
    model = CurvePredictorPallas(input_size, hidden_sizes, output_size,
                                 activation="relu",
                                 l1_lambda=8e-09, l2_lambda=1e-08, key=kp)
    out = jax.block_until_ready(model(x))
    ref = model.forward_ref(x)
    assert out.shape == (batch, output_size)
    assert jnp.allclose(out, ref, atol=1e-5, rtol=1e-5), "Pallas relu mismatch vs reference"

    # Non-divisible batch (50 -> tb=24, grid=3 with a masked partial last tile)
    x_odd = jax.random.uniform(kx2, (50, input_size), jnp.float32)
    out_odd = jax.block_until_ready(model(x_odd))
    ref_odd = model.forward_ref(x_odd)
    assert out_odd.shape == (50, output_size)
    assert jnp.allclose(out_odd, ref_odd, atol=1e-5, rtol=1e-5), \
        "Pallas partial-tile mismatch vs reference"

    # sigmoid model sanity check (exercises the nonzero-activation padding path)
    model_sig = CurvePredictorPallas(input_size, hidden_sizes, output_size,
                                     activation="sigmoid",
                                     l1_lambda=8e-09, l2_lambda=1e-08, key=kp2)
    out_sig = jax.block_until_ready(model_sig(x))
    ref_sig = model_sig.forward_ref(x)
    assert jnp.allclose(out_sig, ref_sig, atol=1e-5, rtol=1e-5), \
        "Pallas sigmoid mismatch vs reference"

    # Regularizers (glue-level, not hot-path):
    _ = jax.block_until_ready(model.l1_loss())
    _ = jax.block_until_ready(model.l2_loss())

    print("KERNEL_OK")
</pallas_src>

<mosaic_0001>
module attributes {stable_mosaic.version = 11 : i64} {
  func.func @_fused_mlp_kernel(%arg0: i32, %arg1: memref<32x128xf32, #tpu.memory_space<vmem>>, %arg2: memref<3x128x128xf32, #tpu.memory_space<vmem>>, %arg3: memref<3x1x128xf32, #tpu.memory_space<vmem>>, %arg4: memref<32x8xf32, #tpu.memory_space<vmem>>) attributes {dimension_semantics = [#tpu.dimension_semantics<parallel>], iteration_bounds = array<i64: 2>, scalar_prefetch = 0 : i64, scratch_operands = 0 : i64, tpu.core_type = #tpu.core_type<tc>, window_params = [{transform_indices = @transform_0, window_bounds = array<i64: 32, 128>}, {pipeline_mode = #tpu.pipeline_mode<synchronous>, transform_indices = @transform_1, window_bounds = array<i64: 3, 128, 128>}, {pipeline_mode = #tpu.pipeline_mode<synchronous>, transform_indices = @transform_2, window_bounds = array<i64: 3, 1, 128>}, {transform_indices = @transform_3, window_bounds = array<i64: 32, 8>}]} {
    %c0 = arith.constant 0 : index
    %c0_0 = arith.constant 0 : index
    %0 = vector.load %arg1[%c0, %c0_0] : memref<32x128xf32, #tpu.memory_space<vmem>>, vector<32x128xf32>
    %c0_1 = arith.constant 0 : index
    %c0_2 = arith.constant 0 : index
    %c0_3 = arith.constant 0 : index
    %1 = vector.load %arg2[%c0_1, %c0_2, %c0_3] : memref<3x128x128xf32, #tpu.memory_space<vmem>>, vector<1x128x128xf32>
    %2 = vector.shape_cast %1 : vector<1x128x128xf32> to vector<128x128xf32>
    %c0_4 = arith.constant 0 : index
    %c0_5 = arith.constant 0 : index
    %c0_6 = arith.constant 0 : index
    %3 = vector.load %arg3[%c0_4, %c0_5, %c0_6] : memref<3x1x128xf32, #tpu.memory_space<vmem>>, vector<1x1x128xf32>
    %4 = vector.shape_cast %3 : vector<1x1x128xf32> to vector<1x128xf32>
    %cst = arith.constant dense<0.000000e+00> : vector<32x128xf32>
    %5 = tpu.matmul %0, %2, %cst {dimension_numbers = #tpu.dot_dimension_numbers<[1], [0], [0], [1], [0, 0, 1, 1], [], []>} : vector<32x128xf32>, vector<128x128xf32>, vector<32x128xf32> -> vector<32x128xf32>
    %6 = vector.broadcast %4 : vector<1x128xf32> to vector<32x128xf32>
    %7 = arith.addf %5, %6 : vector<32x128xf32>
    %cst_7 = arith.constant 0.000000e+00 : f32
    %8 = vector.broadcast %cst_7 : f32 to vector<32x128xf32>
    %9 = arith.maximumf %7, %8 : vector<32x128xf32>
    %c1 = arith.constant 1 : index
    %c0_8 = arith.constant 0 : index
    %c0_9 = arith.constant 0 : index
    %10 = vector.load %arg2[%c1, %c0_8, %c0_9] : memref<3x128x128xf32, #tpu.memory_space<vmem>>, vector<1x128x128xf32>
    %11 = vector.shape_cast %10 : vector<1x128x128xf32> to vector<128x128xf32>
    %c1_10 = arith.constant 1 : index
    %c0_11 = arith.constant 0 : index
    %c0_12 = arith.constant 0 : index
    %12 = vector.load %arg3[%c1_10, %c0_11, %c0_12] : memref<3x1x128xf32, #tpu.memory_space<vmem>>, vector<1x1x128xf32>
    %13 = vector.shape_cast %12 : vector<1x1x128xf32> to vector<1x128xf32>
    %cst_13 = arith.constant dense<0.000000e+00> : vector<32x128xf32>
    %14 = tpu.matmul %9, %11, %cst_13 {dimension_numbers = #tpu.dot_dimension_numbers<[1], [0], [0], [1], [0, 0, 1, 1], [], []>} : vector<32x128xf32>, vector<128x128xf32>, vector<32x128xf32> -> vector<32x128xf32>
    %15 = vector.broadcast %13 : vector<1x128xf32> to vector<32x128xf32>
    %16 = arith.addf %14, %15 : vector<32x128xf32>
    %cst_14 = arith.constant 0.000000e+00 : f32
    %17 = vector.broadcast %cst_14 : f32 to vector<32x128xf32>
    %18 = arith.maximumf %16, %17 : vector<32x128xf32>
    %c2 = arith.constant 2 : index
    %c0_15 = arith.constant 0 : index
    %c0_16 = arith.constant 0 : index
    %19 = vector.load %arg2[%c2, %c0_15, %c0_16] : memref<3x128x128xf32, #tpu.memory_space<vmem>>, vector<1x128x128xf32>
    %20 = vector.shape_cast %19 : vector<1x128x128xf32> to vector<128x128xf32>
    %c2_17 = arith.constant 2 : index
    %c0_18 = arith.constant 0 : index
    %c0_19 = arith.constant 0 : index
    %21 = vector.load %arg3[%c2_17, %c0_18, %c0_19] : memref<3x1x128xf32, #tpu.memory_space<vmem>>, vector<1x1x128xf32>
    %22 = vector.shape_cast %21 : vector<1x1x128xf32> to vector<1x128xf32>
    %cst_20 = arith.constant dense<0.000000e+00> : vector<32x128xf32>
    %23 = tpu.matmul %18, %20, %cst_20 {dimension_numbers = #tpu.dot_dimension_numbers<[1], [0], [0], [1], [0, 0, 1, 1], [], []>} : vector<32x128xf32>, vector<128x128xf32>, vector<32x128xf32> -> vector<32x128xf32>
    %24 = vector.broadcast %22 : vector<1x128xf32> to vector<32x128xf32>
    %25 = arith.addf %23, %24 : vector<32x128xf32>
    %26 = vector.extract_strided_slice %25 {offsets = [0, 0], sizes = [32, 8], strides = [1, 1]} : vector<32x128xf32> to vector<32x8xf32>
    %c0_21 = arith.constant 0 : index
    %c0_22 = arith.constant 0 : index
    %27 = vector.load %arg4[%c0_21, %c0_22] : memref<32x8xf32, #tpu.memory_space<vmem>>, vector<32x8xf32>
    tpu.vector_store %arg4[%c0_21, %c0_22], %26 {strides = array<i32>} : memref<32x8xf32, #tpu.memory_space<vmem>>, vector<32x8xf32>,
    return
  }
  func.func @transform_0(%arg0: i32) -> (i32, i32) {
    %c0_i32 = arith.constant 0 : i32
    %c0_i32_0 = arith.constant 0 : i32
    return %arg0, %c0_i32 : i32, i32
  }
  func.func @transform_1(%arg0: i32) -> (i32, i32, i32) {
    %c0_i32 = arith.constant 0 : i32
    %c0_i32_0 = arith.constant 0 : i32
    %c0_i32_1 = arith.constant 0 : i32
    %c0_i32_2 = arith.constant 0 : i32
    return %c0_i32, %c0_i32_0, %c0_i32_1 : i32, i32, i32
  }
  func.func @transform_2(%arg0: i32) -> (i32, i32, i32) {
    %c0_i32 = arith.constant 0 : i32
    %c0_i32_0 = arith.constant 0 : i32
    %c0_i32_1 = arith.constant 0 : i32
    %c0_i32_2 = arith.constant 0 : i32
    return %c0_i32, %c0_i32_0, %c0_i32_1 : i32, i32, i32
  }
  func.func @transform_3(%arg0: i32) -> (i32, i32) {
    %c0_i32 = arith.constant 0 : i32
    %c0_i32_0 = arith.constant 0 : i32
    return %arg0, %c0_i32 : i32, i32
  }
}

</mosaic_0001>

<llo_original>
// kernel: _fused_mlp_forward.1
$region0: #{_fused_mlp_forward.1}
  #allocation0 [shape = 'u32[]', space=smem, size = 0x4, offset = 0x4, fixed_abs, tag = 'smem constant byte address 0x4 - core index']
  #allocation1 [shape = 'u32[144,128]{1,0:T(1,128)}', space=vmem, size = 0x12000, scoped, tag = 'internal scratch']
  %s0 = inlined_call_operand.vmem [shape: f32[64,128], index: 0, kind: input, shape index: {}]
  %s1 = inlined_call_operand.hbm [shape: f32[3,128,128], index: 1, kind: input, shape index: {}]
  %s2 = inlined_call_operand.vmem [shape: f32[3,1,128], index: 2, kind: input, shape index: {}]
  %s3 = inlined_call_operand.vmem [shape: f32[64,8], index: 3, kind: output, shape index: {}]
  %s4 = sld [smem:[#allocation0]]
  $region49: #{_fused_mlp_forward.1} parent=0
    _
  %s6 = ssub.s32 1, %s4
  %s7 = scalar_select 0, %s6, %s4
  $region1: #{_fused_mlp_forward.1} parent=0
    #allocation2 [shape = 'u8[196608]{0}', space=vmem, size = 0x30000, scoped, tag = 'input window, operand 1, single buffered']
    #allocation3 [shape = 's32[2]{0}', space=sflag, size = 0x8, scoped, tag = 'scoped memory for _fused_mlp_forward.1']
    %8 = vsyncpa [#allocation3], 0
    loop: start=0, step=1, limit=4
    $region2: #{_fused_mlp_forward.1} parent=1 // loop_pre_header
      _
    $region3: #{_fused_mlp_forward.1} parent=1 // loop_header
      %s10 = sphi 0, %s14
      %p11 = scmp.ge.s32.totalorder %s10, 4
      %s20 = sphi 0, %s22
      %s23 = sphi 0, %s20
      %s24 = sphi 0, %s23
      %s40 = sphi 0, %s24
      %s44 = sphi 0, %s44
      %s46 = sphi 0, %s44
      %s47 = sphi 0, %s46
      %s61 = sphi 0, %s47
      %s65 = sphi 0, %s65
      %s67 = sphi 0, %s65
      %s68 = sphi 0, %s67
      %s82 = sphi 0, %s68
      %s88 = sphi 0, %s90
      %s91 = sphi 0, %s88
      %s92 = sphi 0, %s91
      %s108 = sphi 0, %s92
    $region4: #{_fused_mlp_forward.1} parent=1 // loop_header_branch
      %13 = sbr.rel (%p11) target = $region8
    $region5: #{_fused_mlp_forward.1} parent=1 // loop_body
      %s15 = ssub.s32 %s10, 1
      %s16 = ssub.s32 %s10, 2
      %s17 = sadd.s32 %s10, 1
      %s18 = ssub.s32 %s10, %s17
      %p19 = scmp.eq.s32.totalorder %s18, 0
      %s21 = sadd.s32 %s20, 1
      %s22 = scalar_select %p19, %s20, %s21
      %p25 = pneg %p19
      %p26 = scmp.eq.s32.totalorder %s10, 1
      %p27 = por %p25, %p26
      %p28 = scmp.ne.s32.totalorder %s20, %s23
      %p29 = scmp.eq.s32.totalorder %s10, 0
      %p30 = por %p28, %p29
      %p31 = scmp.ne.s32.totalorder %s20, %s23
      %p32 = scmp.eq.s32.totalorder %s15, 1
      %p33 = por %p31, %p32
      %p34 = scmp.ne.s32.totalorder %s23, %s24
      %p35 = scmp.eq.s32.totalorder %s15, 0
      %p36 = por %p34, %p35
      %p37 = scmp.ne.s32.totalorder %s23, %s24
      %p38 = scmp.eq.s32.totalorder %s16, 1
      %p39 = por %p37, %p38
      %p41 = scmp.ne.s32.totalorder %s24, %s40
      %p42 = scmp.eq.s32.totalorder %s16, 0
      %p43 = por %p41, %p42
      %s45 = sadd.s32 %s44, 1
      %p48 = scmp.eq.s32.totalorder %s10, 1
      %p49 = scmp.ne.s32.totalorder %s44, %s46
      %p50 = scmp.eq.s32.totalorder %s10, 0
      %p51 = por %p49, %p50
      %p52 = scmp.ne.s32.totalorder %s44, %s46
      %p53 = scmp.eq.s32.totalorder %s15, 1
      %p54 = por %p52, %p53
      %p55 = scmp.ne.s32.totalorder %s46, %s47
      %p56 = scmp.eq.s32.totalorder %s15, 0
      %p57 = por %p55, %p56
      %p58 = scmp.ne.s32.totalorder %s46, %s47
      %p59 = scmp.eq.s32.totalorder %s16, 1
      %p60 = por %p58, %p59
      %p62 = scmp.ne.s32.totalorder %s47, %s61
      %p63 = scmp.eq.s32.totalorder %s16, 0
      %p64 = por %p62, %p63
      %s66 = sadd.s32 %s65, 1
      %p69 = scmp.eq.s32.totalorder %s10, 1
      %p70 = scmp.ne.s32.totalorder %s65, %s67
      %p71 = scmp.eq.s32.totalorder %s10, 0
      %p72 = por %p70, %p71
      %p73 = scmp.ne.s32.totalorder %s65, %s67
      %p74 = scmp.eq.s32.totalorder %s15, 1
      %p75 = por %p73, %p74
      %p76 = scmp.ne.s32.totalorder %s67, %s68
      %p77 = scmp.eq.s32.totalorder %s15, 0
      %p78 = por %p76, %p77
      %p79 = scmp.ne.s32.totalorder %s67, %s68
      %p80 = scmp.eq.s32.totalorder %s16, 1
      %p81 = por %p79, %p80
      %p83 = scmp.ne.s32.totalorder %s68, %s82
      %p84 = scmp.eq.s32.totalorder %s16, 0
      %p85 = por %p83, %p84
      %s86 = ssub.s32 %s10, %s17
      %p87 = scmp.eq.s32.totalorder %s86, 0
      %s89 = sadd.s32 %s88, 1
      %s90 = scalar_select %p87, %s88, %s89
      %p93 = pneg %p87
      %p94 = scmp.eq.s32.totalorder %s10, 1
      %p95 = por %p93, %p94
      %p96 = scmp.ne.s32.totalorder %s88, %s91
      %p97 = scmp.eq.s32.totalorder %s10, 0
      %p98 = por %p96, %p97
      %p99 = scmp.ne.s32.totalorder %s88, %s91
      %p100 = scmp.eq.s32.totalorder %s15, 1
      %p101 = por %p99, %p100
      %p102 = scmp.ne.s32.totalorder %s91, %s92
      %p103 = scmp.eq.s32.totalorder %s15, 0
      %p104 = por %p102, %p103
      %p105 = scmp.ne.s32.totalorder %s91, %s92
      %p106 = scmp.eq.s32.totalorder %s16, 1
      %p107 = por %p105, %p106
      %p109 = scmp.ne.s32.totalorder %s92, %s108
      %p110 = scmp.eq.s32.totalorder %s16, 0
      %p111 = por %p109, %p110
      %p112 = scmp.le.s32.totalorder 1, %s10
      %p113 = scmp.lt.s32.totalorder %s10, 3
      %p114 = pnand %p112, %p113
      %p115 = pneg %p114
      // Predicated region
      $region9: #{_fused_mlp_forward.1} parent=5 // pred_check
        _
      $region10: #{_fused_mlp_forward.1} parent=5 // pred_check_branch
        %117 = sbr.rel (%p114) target = $region12
      $region11: #{_fused_mlp_forward.1} parent=5 // pred_region
        %s118 = ssub.s32 %s10, 1
        // Predicated region
        $region13: #{_fused_mlp_forward.1} parent=11 // pred_check
          %p119 = pneg %p57
        $region14: #{_fused_mlp_forward.1} parent=11 // pred_check_branch
          %121 = sbr.rel (%p119) target = $region16
        $region15: #{_fused_mlp_forward.1} parent=11 // pred_region
          %s123 = ssub.s32 6144, 6144
          %124 = vsyncadd [#allocation3], %s123
          %s125 = sshll.u32 [#allocation2], 4
          %s126 = int_to_ptr.vmem [resolvable:$true] %s125
          %131 = dma.hbm_to_vmem [thread:$0]  %s1, 6144, %s126, [#allocation3], 128, 128, 8
        $region16: #{_fused_mlp_forward.1} parent=11 // pred_fallthru
          _
        // Predicated region
        $region17: #{_fused_mlp_forward.1} parent=11 // pred_check
          %p132 = pneg %p78
        $region18: #{_fused_mlp_forward.1} parent=11 // pred_check_branch
          %134 = sbr.rel (%p132) target = $region20
        $region19: #{_fused_mlp_forward.1} parent=11 // pred_region
          _
        $region20: #{_fused_mlp_forward.1} parent=11 // pred_fallthru
          _
      $region12: #{_fused_mlp_forward.1} parent=5 // pred_fallthru
        _
      %p135 = scmp.lt.s32.totalorder %s10, 2
      // Predicated region
      $region21: #{_fused_mlp_forward.1} parent=5 // pred_check
        %p136 = pneg %p135
      $region22: #{_fused_mlp_forward.1} parent=5 // pred_check_branch
        %138 = sbr.rel (%p136) target = $region24
      $region23: #{_fused_mlp_forward.1} parent=5 // pred_region
        // Predicated region
        $region25: #{_fused_mlp_forward.1} parent=23 // pred_check
          %p139 = pneg %p30
        $region26: #{_fused_mlp_forward.1} parent=23 // pred_check_branch
          %141 = sbr.rel (%p139) target = $region28
        $region27: #{_fused_mlp_forward.1} parent=23 // pred_region
          %s142 = smul.u32 4, %s10
          %p143 = scmp.lt.s32.totalorder %s142, 7
          %s144 = scalar_select %p143, %s142, 7
          %s145 = smul.addr %s144, 8
          %s146 = scalar_lea.vmem %s0, %s145
          %s147 = smul.u32 4, %s10
        $region28: #{_fused_mlp_forward.1} parent=23 // pred_fallthru
          _
      $region24: #{_fused_mlp_forward.1} parent=5 // pred_fallthru
        _
      %p148 = scmp.le.s32.totalorder 1, %s10
      %p149 = scmp.lt.s32.totalorder %s10, 3
      %p150 = pnand %p148, %p149
      %p151 = pneg %p150
      // Predicated region
      $region29: #{_fused_mlp_forward.1} parent=5 // pred_check
        _
      $region30: #{_fused_mlp_forward.1} parent=5 // pred_check_branch
        %153 = sbr.rel (%p150) target = $region32
      $region31: #{_fused_mlp_forward.1} parent=5 // pred_region
        %s154 = ssub.s32 %s10, 1
        // Predicated region
        $region33: #{_fused_mlp_forward.1} parent=31 // pred_check
          %p155 = pneg %p57
        $region34: #{_fused_mlp_forward.1} parent=31 // pred_check_branch
          %157 = sbr.rel (%p155) target = $region36
        $region35: #{_fused_mlp_forward.1} parent=31 // pred_region
          %158 = dma.done [#allocation3], 6144
        $region36: #{_fused_mlp_forward.1} parent=31 // pred_fallthru
          _
        %s159 = smul.u32 4, %s15
        %p160 = scmp.lt.s32.totalorder %s159, 7
        %s161 = scalar_select %p160, %s159, 7
        %s162 = smul.addr %s161, 8
        %s163 = scalar_lea.vmem %s0, %s162
        %p164 = pneg %p36
        %p165 = pneg %p33
        %p166 = pneg %p57
        %p167 = pneg %p54
        %p168 = pneg %p78
        %p169 = pneg %p75
        %p170 = pneg %p104
        %p171 = pneg %p101
        %s172 = smul.u32 4, %s15
        %p173 = scmp.lt.s32.totalorder %s172, 7
        %s174 = scalar_select %p173, %s172, 7
        %s175 = smul.addr %s174, 8
        %s176 = scalar_lea.vmem %s3, %s175
        %s177 = smul.u32 4, %s15
        %p178 = scmp.lt.s32.totalorder %s177, 7
        %s179 = scalar_select %p178, %s177, 7
        %s180 = smul.addr %s179, 8
        %s181 = scalar_lea.vmem %s0, %s180
        %s182 = smul.u32 4, %s15
        %s183 = smul.u32 4, %s15
        %p184 = scmp.lt.s32.totalorder %s183, 7
        %s185 = scalar_select %p184, %s183, 7
        %s186 = smul.addr %s185, 8
        %s187 = scalar_lea.vmem %s3, %s186
        %s188 = smul.u32 4, %s15
        %v189 = vld [vmem:[%s181] sm:$0xff]
        %v190 = vld [vmem:[%s181 + $0x8] sm:$0xff]
        %v191 = vld [vmem:[%s181 + $0x10] sm:$0xff]
        %v192 = vld [vmem:[%s181 + $0x18] sm:$0xff]
        %v193 = vld [vmem:[#allocation2] sm:$0xff]
        %v194 = vld [vmem:[#allocation2 + $0x8] sm:$0xff]
        %v195 = vld [vmem:[#allocation2 + $0x10] sm:$0xff]
        %v196 = vld [vmem:[#allocation2 + $0x18] sm:$0xff]
        %v197 = vld [vmem:[#allocation2 + $0x20] sm:$0xff]
        %v198 = vld [vmem:[#allocation2 + $0x28] sm:$0xff]
        %v199 = vld [vmem:[#allocation2 + $0x30] sm:$0xff]
        %v200 = vld [vmem:[#allocation2 + $0x38] sm:$0xff]
        %v201 = vld [vmem:[#allocation2 + $0x40] sm:$0xff]
        %v202 = vld [vmem:[#allocation2 + $0x48] sm:$0xff]
        %v203 = vld [vmem:[#allocation2 + $0x50] sm:$0xff]
        %v204 = vld [vmem:[#allocation2 + $0x58] sm:$0xff]
        %v205 = vld [vmem:[#allocation2 + $0x60] sm:$0xff]
        %v206 = vld [vmem:[#allocation2 + $0x68] sm:$0xff]
        %v207 = vld [vmem:[#allocation2 + $0x70] sm:$0xff]
        %v208 = vld [vmem:[#allocation2 + $0x78] sm:$0xff]
        %v209 = vld [vmem:[%s2] sm:$0x1]
        %v211 = vlaneseq
        %v212 = vshrl.u32 %v211, 7
        %v213 = vsub.s32 0, %v212
        %v214 = vrot.slane %v209, %v213
        %216 = vmatprep.subr.mxu0 0.0
        %217 = vmatpush1.msra.mxu0 %v208
        %218 = vmatprep.subr.mxu0 0.0
        %219 = vmatpush1.msra.mxu0 %v207
        %220 = vmatprep.subr.mxu0 0.0
        %221 = vmatpush1.msra.mxu0 %v206
        %222 = vmatprep.subr.mxu0 0.0
        %223 = vmatpush1.msra.mxu0 %v205
        %224 = vmatprep.subr.mxu0 0.0
        %225 = vmatpush1.msra.mxu0 %v204
        %226 = vmatprep.subr.mxu0 0.0
        %227 = vmatpush1.msra.mxu0 %v203
        %228 = vmatprep.subr.mxu0 0.0
        %229 = vmatpush1.msra.mxu0 %v202
        %230 = vmatprep.subr.mxu0 0.0
        %231 = vmatpush1.msra.mxu0 %v201
        %232 = vmatprep.subr.mxu0 0.0
        %233 = vmatpush1.msra.mxu0 %v200
        %234 = vmatprep.subr.mxu0 0.0
        %235 = vmatpush1.msra.mxu0 %v199
        %236 = vmatprep.subr.mxu0 0.0
        %237 = vmatpush1.msra.mxu0 %v198
        %238 = vmatprep.subr.mxu0 0.0
        %239 = vmatpush1.msra.mxu0 %v197
        %240 = vmatprep.subr.mxu0 0.0
        %241 = vmatpush1.msra.mxu0 %v196
        %242 = vmatprep.subr.mxu0 0.0
        %243 = vmatpush1.msra.mxu0 %v195
        %244 = vmatprep.subr.mxu0 0.0
        %245 = vmatpush1.msra.mxu0 %v194
        %246 = vmatprep.subr.mxu0 0.0
        %247 = vmatpush1.msra.mxu0 %v193
        %248 = vmatprep.subr.mxu0 0.0
        %249 = vmatpush2.msra.mxu0 0.0
        %250 = vmatprep.subr.mxu0 0.0
        %251 = vmatpush2.msra.mxu0 0.0
        %252 = vmatprep.subr.mxu0 0.0
        %253 = vmatpush2.msra.mxu0 0.0
        %254 = vmatprep.subr.mxu0 0.0
        %255 = vmatpush2.msra.mxu0 0.0
        %256 = vmatprep.subr.mxu0 0.0
        %257 = vmatpush2.msra.mxu0 0.0
        %258 = vmatprep.subr.mxu0 0.0
        %259 = vmatpush2.msra.mxu0 0.0
        %260 = vmatprep.subr.mxu0 0.0
        %261 = vmatpush2.msra.mxu0 0.0
        %262 = vmatprep.subr.mxu0 0.0
        %263 = vmatpush2.msra.mxu0 0.0
        %264 = vmatprep.subr.mxu0 0.0
        %265 = vmatpush2.msra.mxu0 0.0
        %266 = vmatprep.subr.mxu0 0.0
        %267 = vmatpush2.msra.mxu0 0.0
        %268 = vmatprep.subr.mxu0 0.0
        %269 = vmatpush2.msra.mxu0 0.0
        %270 = vmatprep.subr.mxu0 0.0
        %271 = vmatpush2.msra.mxu0 0.0
        %272 = vmatprep.subr.mxu0 0.0
        %273 = vmatpush2.msra.mxu0 0.0
        %274 = vmatprep.subr.mxu0 0.0
        %275 = vmatpush2.msra.mxu0 0.0
        %276 = vmatprep.subr.mxu0 0.0
        %277 = vmatpush2.msra.mxu0 0.0
        %278 = vmatprep.subr.mxu0 0.0
        %279 = vmatpush2.msra.mxu0 0.0
        %280 = vmatprep.mubr.f32.mxu0 0.0
        %281 = vmatmul.mubr.f32.gmra.mxu0 %v189
        %v282 = vpop.f32.mrf.mxu0
        %v283 = vadd.f32 %v214, %v282
        %v284 = vpop.f32.mrf.mxu0
        %285 = vmatprep.mubr.f32.mxu0 0.0
        %286 = vmatmul.mubr.f32.gmra.mxu0 %v190
        %v287 = vpop.f32.mrf.mxu0
        %v288 = vadd.f32 %v214, %v287
        %v289 = vpop.f32.mrf.mxu0
        %290 = vmatprep.mubr.f32.mxu0 0.0
        %291 = vmatmul.mubr.f32.gmra.mxu0 %v191
        %v292 = vpop.f32.mrf.mxu0
        %v293 = vadd.f32 %v214, %v292
        %v294 = vpop.f32.mrf.mxu0
        %295 = vmatprep.mubr.f32.mxu0 0.0
        %296 = vmatmul.mubr.f32.gmra.mxu0 %v192
        %v297 = vpop.f32.mrf.mxu0
        %v298 = vadd.f32 %v214, %v297
        %v299 = vpop.f32.mrf.mxu0
        %300 = vdwg.mxu0
        %v301 = vmax.f32 %v283, 0.0
        %v302 = vmax.f32 %v288, 0.0
        %v303 = vmax.f32 %v293, 0.0
        %v304 = vmax.f32 %v298, 0.0
        %s305 = scalar_lea.vmem [#allocation2], 128
        %v306 = vld [vmem:[%s305] sm:$0xff]
        %v307 = vld [vmem:[%s305 + $0x8] sm:$0xff]
        %v308 = vld [vmem:[%s305 + $0x10] sm:$0xff]
        %v309 = vld [vmem:[%s305 + $0x18] sm:$0xff]
        %v310 = vld [vmem:[%s305 + $0x20] sm:$0xff]
        %v311 = vld [vmem:[%s305 + $0x28] sm:$0xff]
        %v312 = vld [vmem:[%s305 + $0x30] sm:$0xff]
        %v313 = vld [vmem:[%s305 + $0x38] sm:$0xff]
        %v314 = vld [vmem:[%s305 + $0x40] sm:$0xff]
        %v315 = vld [vmem:[%s305 + $0x48] sm:$0xff]
        %v316 = vld [vmem:[%s305 + $0x50] sm:$0xff]
        %v317 = vld [vmem:[%s305 + $0x58] sm:$0xff]
        %v318 = vld [vmem:[%s305 + $0x60] sm:$0xff]
        %v319 = vld [vmem:[%s305 + $0x68] sm:$0xff]
        %v320 = vld [vmem:[%s305 + $0x70] sm:$0xff]
        %v321 = vld [vmem:[%s305 + $0x78] sm:$0xff]
        %s322 = scalar_lea.vmem %s2, 1
        %v323 = vld [vmem:[%s322] sm:$0x1]
        %v325 = vlaneseq
        %v326 = vshrl.u32 %v325, 7
        %v327 = vsub.s32 0, %v326
        %v328 = vrot.slane %v323, %v327
        %330 = vmatprep.subr.mxu0 0.0
        %331 = vmatpush1.msra.mxu0 %v321
        %332 = vmatprep.subr.mxu0 0.0
        %333 = vmatpush1.msra.mxu0 %v320
        %334 = vmatprep.subr.mxu0 0.0
        %335 = vmatpush1.msra.mxu0 %v319
        %336 = vmatprep.subr.mxu0 0.0
        %337 = vmatpush1.msra.mxu0 %v318
        %338 = vmatprep.subr.mxu0 0.0
        %339 = vmatpush1.msra.mxu0 %v317
        %340 = vmatprep.subr.mxu0 0.0
        %341 = vmatpush1.msra.mxu0 %v316
        %342 = vmatprep.subr.mxu0 0.0
        %343 = vmatpush1.msra.mxu0 %v315
        %344 = vmatprep.subr.mxu0 0.0
        %345 = vmatpush1.msra.mxu0 %v314
        %346 = vmatprep.subr.mxu0 0.0
        %347 = vmatpush1.msra.mxu0 %v313
        %348 = vmatprep.subr.mxu0 0.0
        %349 = vmatpush1.msra.mxu0 %v312
        %350 = vmatprep.subr.mxu0 0.0
        %351 = vmatpush1.msra.mxu0 %v311
        %352 = vmatprep.subr.mxu0 0.0
        %353 = vmatpush1.msra.mxu0 %v310
        %354 = vmatprep.subr.mxu0 0.0
        %355 = vmatpush1.msra.mxu0 %v309
        %356 = vmatprep.subr.mxu0 0.0
        %357 = vmatpush1.msra.mxu0 %v308
        %358 = vmatprep.subr.mxu0 0.0
        %359 = vmatpush1.msra.mxu0 %v307
        %360 = vmatprep.subr.mxu0 0.0
        %361 = vmatpush1.msra.mxu0 %v306
        %362 = vmatprep.subr.mxu0 0.0
        %363 = vmatpush2.msra.mxu0 0.0
        %364 = vmatprep.subr.mxu0 0.0
        %365 = vmatpush2.msra.mxu0 0.0
        %366 = vmatprep.subr.mxu0 0.0
        %367 = vmatpush2.msra.mxu0 0.0
        %368 = vmatprep.subr.mxu0 0.0
        %369 = vmatpush2.msra.mxu0 0.0
        %370 = vmatprep.subr.mxu0 0.0
        %371 = vmatpush2.msra.mxu0 0.0
        %372 = vmatprep.subr.mxu0 0.0
        %373 = vmatpush2.msra.mxu0 0.0
        %374 = vmatprep.subr.mxu0 0.0
        %375 = vmatpush2.msra.mxu0 0.0
        %376 = vmatprep.subr.mxu0 0.0
        %377 = vmatpush2.msra.mxu0 0.0
        %378 = vmatprep.subr.mxu0 0.0
        %379 = vmatpush2.msra.mxu0 0.0
        %380 = vmatprep.subr.mxu0 0.0
        %381 = vmatpush2.msra.mxu0 0.0
        %382 = vmatprep.subr.mxu0 0.0
        %383 = vmatpush2.msra.mxu0 0.0
        %384 = vmatprep.subr.mxu0 0.0
        %385 = vmatpush2.msra.mxu0 0.0
        %386 = vmatprep.subr.mxu0 0.0
        %387 = vmatpush2.msra.mxu0 0.0
        %388 = vmatprep.subr.mxu0 0.0
        %389 = vmatpush2.msra.mxu0 0.0
        %390 = vmatprep.subr.mxu0 0.0
        %391 = vmatpush2.msra.mxu0 0.0
        %392 = vmatprep.subr.mxu0 0.0
        %393 = vmatpush2.msra.mxu0 0.0
        %394 = vmatprep.mubr.f32.mxu0 0.0
        %395 = vmatmul.mubr.f32.gmra.mxu0 %v301
        %v396 = vpop.f32.mrf.mxu0
        %v397 = vadd.f32 %v328, %v396
        %v398 = vpop.f32.mrf.mxu0
        %399 = vmatprep.mubr.f32.mxu0 0.0
        %400 = vmatmul.mubr.f32.gmra.mxu0 %v302
        %v401 = vpop.f32.mrf.mxu0
        %v402 = vadd.f32 %v328, %v401
        %v403 = vpop.f32.mrf.mxu0
        %404 = vmatprep.mubr.f32.mxu0 0.0
        %405 = vmatmul.mubr.f32.gmra.mxu0 %v303
        %v406 = vpop.f32.mrf.mxu0
        %v407 = vadd.f32 %v328, %v406
        %v408 = vpop.f32.mrf.mxu0
        %409 = vmatprep.mubr.f32.mxu0 0.0
        %410 = vmatmul.mubr.f32.gmra.mxu0 %v304
        %v411 = vpop.f32.mrf.mxu0
        %v412 = vadd.f32 %v328, %v411
        %v413 = vpop.f32.mrf.mxu0
        %414 = vdwg.mxu0
        %v415 = vmax.f32 %v397, 0.0
        %v416 = vmax.f32 %v402, 0.0
        %v417 = vmax.f32 %v407, 0.0
        %v418 = vmax.f32 %v412, 0.0
        %s419 = scalar_lea.vmem [#allocation2], 256
        %v420 = vld [vmem:[%s419] sm:$0xff]
        %v421 = vld [vmem:[%s419 + $0x8] sm:$0xff]
        %v422 = vld [vmem:[%s419 + $0x10] sm:$0xff]
        %v423 = vld [vmem:[%s419 + $0x18] sm:$0xff]
        %v424 = vld [vmem:[%s419 + $0x20] sm:$0xff]
        %v425 = vld [vmem:[%s419 + $0x28] sm:$0xff]
        %v426 = vld [vmem:[%s419 + $0x30] sm:$0xff]
        %v427 = vld [vmem:[%s419 + $0x38] sm:$0xff]
        %v428 = vld [vmem:[%s419 + $0x40] sm:$0xff]
        %v429 = vld [vmem:[%s419 + $0x48] sm:$0xff]
        %v430 = vld [vmem:[%s419 + $0x50] sm:$0xff]
        %v431 = vld [vmem:[%s419 + $0x58] sm:$0xff]
        %v432 = vld [vmem:[%s419 + $0x60] sm:$0xff]
        %v433 = vld [vmem:[%s419 + $0x68] sm:$0xff]
        %v434 = vld [vmem:[%s419 + $0x70] sm:$0xff]
        %v435 = vld [vmem:[%s419 + $0x78] sm:$0xff]
        %s436 = scalar_lea.vmem %s2, 2
        %v437 = vld [vmem:[%s436] sm:$0x1]
        %v439 = vlaneseq
        %v440 = vshrl.u32 %v439, 7
        %v441 = vsub.s32 0, %v440
        %v442 = vrot.slane %v437, %v441
        %444 = vmatprep.subr.mxu0 0.0
        %445 = vmatpush1.msra.mxu0 %v435
        %446 = vmatprep.subr.mxu0 0.0
        %447 = vmatpush1.msra.mxu0 %v434
        %448 = vmatprep.subr.mxu0 0.0
        %449 = vmatpush1.msra.mxu0 %v433
        %450 = vmatprep.subr.mxu0 0.0
        %451 = vmatpush1.msra.mxu0 %v432
        %452 = vmatprep.subr.mxu0 0.0
        %453 = vmatpush1.msra.mxu0 %v431
        %454 = vmatprep.subr.mxu0 0.0
        %455 = vmatpush1.msra.mxu0 %v430
        %456 = vmatprep.subr.mxu0 0.0
        %457 = vmatpush1.msra.mxu0 %v429
        %458 = vmatprep.subr.mxu0 0.0
        %459 = vmatpush1.msra.mxu0 %v428
        %460 = vmatprep.subr.mxu0 0.0
        %461 = vmatpush1.msra.mxu0 %v427
        %462 = vmatprep.subr.mxu0 0.0
        %463 = vmatpush1.msra.mxu0 %v426
        %464 = vmatprep.subr.mxu0 0.0
        %465 = vmatpush1.msra.mxu0 %v425
        %466 = vmatprep.subr.mxu0 0.0
        %467 = vmatpush1.msra.mxu0 %v424
        %468 = vmatprep.subr.mxu0 0.0
        %469 = vmatpush1.msra.mxu0 %v423
        %470 = vmatprep.subr.mxu0 0.0
        %471 = vmatpush1.msra.mxu0 %v422
        %472 = vmatprep.subr.mxu0 0.0
        %473 = vmatpush1.msra.mxu0 %v421
        %474 = vmatprep.subr.mxu0 0.0
        %475 = vmatpush1.msra.mxu0 %v420
        %476 = vmatprep.subr.mxu0 0.0
        %477 = vmatpush2.msra.mxu0 0.0
        %478 = vmatprep.subr.mxu0 0.0
        %479 = vmatpush2.msra.mxu0 0.0
        %480 = vmatprep.subr.mxu0 0.0
        %481 = vmatpush2.msra.mxu0 0.0
        %482 = vmatprep.subr.mxu0 0.0
        %483 = vmatpush2.msra.mxu0 0.0
        %484 = vmatprep.subr.mxu0 0.0
        %485 = vmatpush2.msra.mxu0 0.0
        %486 = vmatprep.subr.mxu0 0.0
        %487 = vmatpush2.msra.mxu0 0.0
        %488 = vmatprep.subr.mxu0 0.0
        %489 = vmatpush2.msra.mxu0 0.0
        %490 = vmatprep.subr.mxu0 0.0
        %491 = vmatpush2.msra.mxu0 0.0
        %492 = vmatprep.subr.mxu0 0.0
        %493 = vmatpush2.msra.mxu0 0.0
        %494 = vmatprep.subr.mxu0 0.0
        %495 = vmatpush2.msra.mxu0 0.0
        %496 = vmatprep.subr.mxu0 0.0
        %497 = vmatpush2.msra.mxu0 0.0
        %498 = vmatprep.subr.mxu0 0.0
        %499 = vmatpush2.msra.mxu0 0.0
        %500 = vmatprep.subr.mxu0 0.0
        %501 = vmatpush2.msra.mxu0 0.0
        %502 = vmatprep.subr.mxu0 0.0
        %503 = vmatpush2.msra.mxu0 0.0
        %504 = vmatprep.subr.mxu0 0.0
        %505 = vmatpush2.msra.mxu0 0.0
        %506 = vmatprep.subr.mxu0 0.0
        %507 = vmatpush2.msra.mxu0 0.0
        %508 = vmatprep.mubr.f32.mxu0 0.0
        %509 = vmatmul.mubr.f32.gmra.mxu0 %v415
        %v510 = vpop.f32.mrf.mxu0
        %v511 = vadd.f32 %v442, %v510
        %v512 = vpop.f32.mrf.mxu0
        %513 = vmatprep.mubr.f32.mxu0 0.0
        %514 = vmatmul.mubr.f32.gmra.mxu0 %v416
        %v515 = vpop.f32.mrf.mxu0
        %v516 = vadd.f32 %v442, %v515
        %v517 = vpop.f32.mrf.mxu0
        %518 = vmatprep.mubr.f32.mxu0 0.0
        %519 = vmatmul.mubr.f32.gmra.mxu0 %v417
        %v520 = vpop.f32.mrf.mxu0
        %v521 = vadd.f32 %v442, %v520
        %v522 = vpop.f32.mrf.mxu0
        %523 = vmatprep.mubr.f32.mxu0 0.0
        %524 = vmatmul.mubr.f32.gmra.mxu0 %v418
        %v525 = vpop.f32.mrf.mxu0
        %v526 = vadd.f32 %v442, %v525
        %v527 = vpop.f32.mrf.mxu0
        %528 = vdwg.mxu0
        %vm529 = vcmask 64512
        %530 = vst.msk [vmem:[%s187] sm:$0xff] %vm529, %v511
        %531 = vst.msk [vmem:[%s187 + $0x8] sm:$0xff] %vm529, %v516
        %532 = vst.msk [vmem:[%s187 + $0x10] sm:$0xff] %vm529, %v521
        %533 = vst.msk [vmem:[%s187 + $0x18] sm:$0xff] %vm529, %v526
        %s534 = smul.u32 4, %s15
        %p535 = scmp.lt.s32.totalorder %s534, 7
        %s536 = scalar_select %p535, %s534, 7
        %s537 = smul.addr %s536, 8
        %s538 = scalar_lea.vmem %s3, %s537
        // Predicated region
        $region37: #{_fused_mlp_forward.1} parent=31 // pred_check
          %p539 = pneg %p101
        $region38: #{_fused_mlp_forward.1} parent=31 // pred_check_branch
          %541 = sbr.rel (%p539) target = $region40
        $region39: #{_fused_mlp_forward.1} parent=31 // pred_region
          %s542 = smul.u32 4, %s15
        $region40: #{_fused_mlp_forward.1} parent=31 // pred_fallthru
          _
      $region32: #{_fused_mlp_forward.1} parent=5 // pred_fallthru
        _
      %p543 = scmp.le.s32.totalorder 2, %s10
      // Predicated region
      $region41: #{_fused_mlp_forward.1} parent=5 // pred_check
        %p544 = pneg %p543
      $region42: #{_fused_mlp_forward.1} parent=5 // pred_check_branch
        %546 = sbr.rel (%p544) target = $region44
      $region43: #{_fused_mlp_forward.1} parent=5 // pred_region
        %s547 = ssub.s32 %s10, 2
        // Predicated region
        $region45: #{_fused_mlp_forward.1} parent=43 // pred_check
          %p548 = pneg %p107
        $region46: #{_fused_mlp_forward.1} parent=43 // pred_check_branch
          %550 = sbr.rel (%p548) target = $region48
        $region47: #{_fused_mlp_forward.1} parent=43 // pred_region
          %s551 = smul.u32 4, %s16
          %p552 = scmp.lt.s32.totalorder %s551, 7
          %s553 = scalar_select %p552, %s551, 7
          %s554 = smul.addr %s553, 8
          %s555 = scalar_lea.vmem %s3, %s554
        $region48: #{_fused_mlp_forward.1} parent=43 // pred_fallthru
          _
      $region44: #{_fused_mlp_forward.1} parent=5 // pred_fallthru
        _
    $region6: #{_fused_mlp_forward.1} parent=1 // loop_footer
      %s14 = sadd.s32 1, %s10
    $region7: #{_fused_mlp_forward.1} parent=1 // loop_footer_branch
      %9 = sbr.rel target = $region3
    $region8: #{_fused_mlp_forward.1} parent=1 // loop_exit
      _
    %556 = vsyncpa [#allocation3], 1
    %s557 = scalar_lea.sflag [#allocation3], 1
    %558 = vsyncpa %s557, 1

</llo_original>
